<compile_context>
chip_gen: v7x
topology: tpu7x:2x2x1
jax: 0.10.0
libtpu: 0.0.40
codegen_flags: <defaults>
</compile_context>

<pallas_src>
import functools

import jax
import jax.numpy as jnp
from jax.experimental import pallas as pl
from jax.experimental.pallas import tpu as pltpu


def _group_norm_kernel(x_ref, w_ref, b_ref, o_ref, *, eps, denom):
    # x_ref / o_ref: (GB, Cg, HW);  w_ref / b_ref: (GB, Cg, 1)
    x = x_ref[...].astype(jnp.float32)

    # Single reduction pass: per-group sum and sum-of-squares
    # (lane reduce first, then the cheap cross-sublane reduce).
    s1 = jnp.sum(jnp.sum(x, axis=2, keepdims=True), axis=1, keepdims=True)
    s2 = jnp.sum(jnp.sum(x * x, axis=2, keepdims=True), axis=1, keepdims=True)

    mean = s1 * (1.0 / denom)                                     # (GB, 1, 1)
    # Unbiased variance (divide by n-1) to match Tensor.var() in the module.
    var = jnp.maximum(s2 - s1 * mean, 0.0) * (1.0 / (denom - 1.0))
    inv_std = jax.lax.rsqrt(var + eps)                            # (GB, 1, 1)

    # Fold normalize + per-channel affine into one FMA write pass.
    a = w_ref[...].astype(jnp.float32) * inv_std                  # (GB, Cg, 1)
    c = b_ref[...].astype(jnp.float32) - mean * a                 # (GB, Cg, 1)
    o_ref[...] = (x * a + c).astype(o_ref.dtype)


def group_norm(x, weight, bias, num_groups, eps=1e-5):
    """x: (N, C, H, W); weight/bias: (1, C, 1, 1) (PyTorch param shapes)."""
    N, C, H, W = x.shape
    G = int(num_groups)
    assert C % G == 0
    Cg = C // G
    HW = H * W
    NG = N * G

    # Zero-copy view: each leading row is one (batch, group).
    x_g = x.reshape(NG, Cg, HW)

    # Compact per-row affine params: (NG, Cg, 1) == N*C scalars total.
    w_rows = jnp.broadcast_to(weight.reshape(1, G, Cg), (N, G, Cg)).reshape(NG, Cg, 1)
    b_rows = jnp.broadcast_to(bias.reshape(1, G, Cg), (N, G, Cg)).reshape(NG, Cg, 1)

    # ---- choose how many whole groups go into one block --------------------
    cg_pad = ((Cg + 7) // 8) * 8             # sublane padding of a (Cg, HW) slab
    hw_pad = ((HW + 127) // 128) * 128       # lane padding
    bytes_per_group = cg_pad * hw_pad * 4    # f32 compute footprint per group
    gb_by_vmem = max(1, (1 << 20) // bytes_per_group)   # target ~1 MiB blocks
    gb_by_steps = max(1, NG // 8)            # keep >= 8 grid steps when possible
    gb_max = max(1, min(gb_by_vmem, gb_by_steps, NG))
    GB = 1
    for d in range(gb_max, 0, -1):           # GB must divide NG (no masked tail)
        if NG % d == 0:
            GB = d
            break

    blk_f32 = GB * bytes_per_group
    # Explicit VMEM budget with headroom; capped at 64 MiB (v7x physical).
    vmem_limit = int(min(64 * 2**20, max(32 * 2**20, 8 * blk_f32)))

    total = N * C * H * W
    cost = pl.CostEstimate(
        flops=5 * total,                     # x*x, reductions, final FMA
        transcendentals=NG,                  # one rsqrt per (batch, group)
        bytes_accessed=2 * total * x.dtype.itemsize + 2 * N * C * 4,
    )

    out = pl.pallas_call(
        functools.partial(_group_norm_kernel, eps=float(eps), denom=float(Cg * HW)),
        out_shape=jax.ShapeDtypeStruct((NG, Cg, HW), x.dtype),
        grid=(NG // GB,),
        in_specs=[
            pl.BlockSpec((GB, Cg, HW), lambda i: (i, 0, 0)),  # x block
            pl.BlockSpec((GB, Cg, 1), lambda i: (i, 0, 0)),   # weight (compact)
            pl.BlockSpec((GB, Cg, 1), lambda i: (i, 0, 0)),   # bias   (compact)
        ],
        out_specs=pl.BlockSpec((GB, Cg, HW), lambda i: (i, 0, 0)),
        compiler_params=pltpu.CompilerParams(
            dimension_semantics=("parallel",),
            vmem_limit_bytes=vmem_limit,
        ),
        cost_estimate=cost,
    )(x_g, w_rows, b_rows)

    return out.reshape(N, C, H, W)


def group_norm_ref(x, weight, bias, num_groups, eps=1e-5):
    """Pure-JAX reference mirroring the PyTorch forward (unbiased var)."""
    N, C, H, W = x.shape
    G = num_groups
    xr = x.reshape(N, G, -1)
    mean = jnp.mean(xr, axis=-1, keepdims=True)
    var = jnp.sum((xr - mean) ** 2, axis=-1, keepdims=True) / (xr.shape[-1] - 1)
    xn = (xr - mean) / jnp.sqrt(var + eps)
    return xn.reshape(N, C, H, W) * weight + bias


if __name__ == "__main__":
    # Small shapes consistent with the module: N=2, C=4, H=W=16, G=2.
    N, C, H, W = 2, 4, 16, 16
    G = 2
    eps = 1e-5

    key = jax.random.PRNGKey(0)
    kx, kw, kb = jax.random.split(key, 3)
    x = jax.random.normal(kx, (N, C, H, W), dtype=jnp.float32)

    # Module __init__ uses ones/zeros of shape (1, C, 1, 1); perturb them
    # deterministically so the affine path is actually exercised.
    weight = jnp.ones((1, C, 1, 1), jnp.float32) + 0.1 * jax.random.normal(
        kw, (1, C, 1, 1), dtype=jnp.float32
    )
    bias = jnp.zeros((1, C, 1, 1), jnp.float32) + 0.1 * jax.random.normal(
        kb, (1, C, 1, 1), dtype=jnp.float32
    )

    out = group_norm(x, weight, bias, num_groups=G, eps=eps)
    out = jax.block_until_ready(out)

    ref = group_norm_ref(x, weight, bias, num_groups=G, eps=eps)
    assert out.shape == (N, C, H, W)
    assert jnp.allclose(out, ref, atol=1e-4, rtol=1e-4), "mismatch vs reference"

    print("KERNEL_OK")
</pallas_src>

<mosaic_0001>
module attributes {stable_mosaic.version = 11 : i64} {
  func.func @_group_norm_kernel(%arg0: i32, %arg1: memref<1x2x256xf32, #tpu.memory_space<vmem>>, %arg2: memref<1x2x1xf32, #tpu.memory_space<vmem>>, %arg3: memref<1x2x1xf32, #tpu.memory_space<vmem>>, %arg4: memref<1x2x256xf32, #tpu.memory_space<vmem>>) attributes {dimension_semantics = [#tpu.dimension_semantics<parallel>], iteration_bounds = array<i64: 4>, scalar_prefetch = 0 : i64, scratch_operands = 0 : i64, tpu.core_type = #tpu.core_type<tc>, window_params = [{transform_indices = @transform_0, window_bounds = array<i64: 1, 2, 256>}, {transform_indices = @transform_1, window_bounds = array<i64: 1, 2, 1>}, {transform_indices = @transform_2, window_bounds = array<i64: 1, 2, 1>}, {transform_indices = @transform_3, window_bounds = array<i64: 1, 2, 256>}]} {
    %c0 = arith.constant 0 : index
    %c0_0 = arith.constant 0 : index
    %c0_1 = arith.constant 0 : index
    %0 = vector.load %arg1[%c0, %c0_0, %c0_1] : memref<1x2x256xf32, #tpu.memory_space<vmem>>, vector<1x2x256xf32>
    %cst = arith.constant dense<0.000000e+00> : vector<1x2xf32>
    %1 = vector.multi_reduction <add>, %0, %cst [2] : vector<1x2x256xf32> to vector<1x2xf32>
    %2 = vector.shape_cast %1 : vector<1x2xf32> to vector<1x2x1xf32>
    %cst_2 = arith.constant dense<0.000000e+00> : vector<1x1xf32>
    %3 = vector.multi_reduction <add>, %2, %cst_2 [1] : vector<1x2x1xf32> to vector<1x1xf32>
    %4 = vector.shape_cast %3 : vector<1x1xf32> to vector<1x1x1xf32>
    %5 = arith.mulf %0, %0 : vector<1x2x256xf32>
    %cst_3 = arith.constant dense<0.000000e+00> : vector<1x2xf32>
    %6 = vector.multi_reduction <add>, %5, %cst_3 [2] : vector<1x2x256xf32> to vector<1x2xf32>
    %7 = vector.shape_cast %6 : vector<1x2xf32> to vector<1x2x1xf32>
    %cst_4 = arith.constant dense<0.000000e+00> : vector<1x1xf32>
    %8 = vector.multi_reduction <add>, %7, %cst_4 [1] : vector<1x2x1xf32> to vector<1x1xf32>
    %9 = vector.shape_cast %8 : vector<1x1xf32> to vector<1x1x1xf32>
    %cst_5 = arith.constant 0.001953125 : f32
    %10 = vector.broadcast %cst_5 : f32 to vector<1x1x1xf32>
    %11 = arith.mulf %4, %10 : vector<1x1x1xf32>
    %12 = arith.mulf %4, %11 : vector<1x1x1xf32>
    %13 = arith.subf %9, %12 : vector<1x1x1xf32>
    %cst_6 = arith.constant 0.000000e+00 : f32
    %14 = vector.broadcast %cst_6 : f32 to vector<1x1x1xf32>
    %15 = arith.maximumf %13, %14 : vector<1x1x1xf32>
    %cst_7 = arith.constant 0.00195694715 : f32
    %16 = vector.broadcast %cst_7 : f32 to vector<1x1x1xf32>
    %17 = arith.mulf %15, %16 : vector<1x1x1xf32>
    %cst_8 = arith.constant 9.99999974E-6 : f32
    %18 = vector.broadcast %cst_8 : f32 to vector<1x1x1xf32>
    %19 = arith.addf %17, %18 : vector<1x1x1xf32>
    %20 = math.rsqrt %19 : vector<1x1x1xf32>
    %c0_9 = arith.constant 0 : index
    %c0_10 = arith.constant 0 : index
    %c0_11 = arith.constant 0 : index
    %21 = vector.load %arg2[%c0_9, %c0_10, %c0_11] : memref<1x2x1xf32, #tpu.memory_space<vmem>>, vector<1x2x1xf32>
    %22 = vector.broadcast %20 : vector<1x1x1xf32> to vector<1x2x1xf32>
    %23 = arith.mulf %21, %22 : vector<1x2x1xf32>
    %c0_12 = arith.constant 0 : index
    %c0_13 = arith.constant 0 : index
    %c0_14 = arith.constant 0 : index
    %24 = vector.load %arg3[%c0_12, %c0_13, %c0_14] : memref<1x2x1xf32, #tpu.memory_space<vmem>>, vector<1x2x1xf32>
    %25 = vector.broadcast %11 : vector<1x1x1xf32> to vector<1x2x1xf32>
    %26 = arith.mulf %25, %23 : vector<1x2x1xf32>
    %27 = arith.subf %24, %26 : vector<1x2x1xf32>
    %28 = vector.broadcast %23 : vector<1x2x1xf32> to vector<1x2x256xf32>
    %29 = arith.mulf %0, %28 : vector<1x2x256xf32>
    %30 = vector.broadcast %27 : vector<1x2x1xf32> to vector<1x2x256xf32>
    %31 = arith.addf %29, %30 : vector<1x2x256xf32>
    %c0_15 = arith.constant 0 : index
    %c0_16 = arith.constant 0 : index
    %c0_17 = arith.constant 0 : index
    %32 = vector.load %arg4[%c0_15, %c0_16, %c0_17] : memref<1x2x256xf32, #tpu.memory_space<vmem>>, vector<1x2x256xf32>
    tpu.vector_store %arg4[%c0_15, %c0_16, %c0_17], %31 {strides = array<i32>} : memref<1x2x256xf32, #tpu.memory_space<vmem>>, vector<1x2x256xf32>,
    return
  }
  func.func @transform_0(%arg0: i32) -> (i32, i32, i32) {
    %c0_i32 = arith.constant 0 : i32
    %c0_i32_0 = arith.constant 0 : i32
    %c0_i32_1 = arith.constant 0 : i32
    return %arg0, %c0_i32, %c0_i32_0 : i32, i32, i32
  }
  func.func @transform_1(%arg0: i32) -> (i32, i32, i32) {
    %c0_i32 = arith.constant 0 : i32
    %c0_i32_0 = arith.constant 0 : i32
    %c0_i32_1 = arith.constant 0 : i32
    return %arg0, %c0_i32, %c0_i32_0 : i32, i32, i32
  }
  func.func @transform_2(%arg0: i32) -> (i32, i32, i32) {
    %c0_i32 = arith.constant 0 : i32
    %c0_i32_0 = arith.constant 0 : i32
    %c0_i32_1 = arith.constant 0 : i32
    return %arg0, %c0_i32, %c0_i32_0 : i32, i32, i32
  }
  func.func @transform_3(%arg0: i32) -> (i32, i32, i32) {
    %c0_i32 = arith.constant 0 : i32
    %c0_i32_0 = arith.constant 0 : i32
    %c0_i32_1 = arith.constant 0 : i32
    return %arg0, %c0_i32, %c0_i32_0 : i32, i32, i32
  }
}

</mosaic_0001>

<llo_original>
// kernel: tpu_custom_call.1
$region0: #{tpu_custom_call.1}
  #allocation0 [shape = 'u32[]', space=smem, size = 0x4, offset = 0x4, fixed_abs, tag = 'smem constant byte address 0x4 - core index']
  #allocation1 [shape = 'u32[144,128]{1,0:T(1,128)}', space=vmem, size = 0x12000, scoped, tag = 'internal scratch']
  %s0 = inlined_call_operand.vmem [shape: f32[4,2,256], index: 0, kind: input, shape index: {}]
  %s1 = inlined_call_operand.vmem [shape: f32[4,2,1], index: 1, kind: input, shape index: {}]
  %s2 = inlined_call_operand.vmem [shape: f32[4,2,1], index: 2, kind: input, shape index: {}]
  %s3 = inlined_call_operand.hbm [shape: f32[4,2,256], index: 3, kind: output, shape index: {}]
  %s4 = sld [smem:[#allocation0]]
  $region45: #{tpu_custom_call.1} parent=0
    _
  %s6 = ssub.s32 1, %s4
  %s7 = scalar_select 0, %s6, %s4
  $region1: #{tpu_custom_call.1} parent=0
    #allocation2 [shape = 'u8[4096]{0}', space=vmem, size = 0x1000, scoped, tag = 'output window, operand 0']
    #allocation3 [shape = 's32[2]{0}', space=sflag, size = 0x8, scoped, tag = 'scoped memory for tpu_custom_call.1']
    %8 = vsyncpa [#allocation3], 0
    %s9 = scalar_lea.sflag [#allocation3], 1
    %10 = vsyncpa %s9, 0
    loop: start=0, step=1, limit=6
    $region2: #{tpu_custom_call.1} parent=1 // loop_pre_header
      _
    $region3: #{tpu_custom_call.1} parent=1 // loop_header
      %s12 = sphi 0, %s16
      %p13 = scmp.ge.s32.totalorder %s12, 6
      %s22 = sphi 0, %s24
      %s25 = sphi 0, %s22
      %s26 = sphi 0, %s25
      %s42 = sphi 0, %s26
      %s48 = sphi 0, %s50
      %s51 = sphi 0, %s48
      %s52 = sphi 0, %s51
      %s68 = sphi 0, %s52
      %s74 = sphi 0, %s76
      %s77 = sphi 0, %s74
      %s78 = sphi 0, %s77
      %s94 = sphi 0, %s78
      %s100 = sphi 0, %s102
      %s103 = sphi 0, %s100
      %s104 = sphi 0, %s103
      %s120 = sphi 0, %s104
    $region4: #{tpu_custom_call.1} parent=1 // loop_header_branch
      %15 = sbr.rel (%p13) target = $region8
    $region5: #{tpu_custom_call.1} parent=1 // loop_body
      %s17 = ssub.s32 %s12, 1
      %s18 = ssub.s32 %s12, 2
      %s19 = sadd.s32 %s12, 1
      %s20 = ssub.s32 %s12, %s19
      %p21 = scmp.eq.s32.totalorder %s20, 0
      %s23 = sadd.s32 %s22, 1
      %s24 = scalar_select %p21, %s22, %s23
      %p27 = pneg %p21
      %p28 = scmp.eq.s32.totalorder %s12, 3
      %p29 = por %p27, %p28
      %p30 = scmp.ne.s32.totalorder %s22, %s25
      %p31 = scmp.eq.s32.totalorder %s12, 0
      %p32 = por %p30, %p31
      %p33 = scmp.ne.s32.totalorder %s22, %s25
      %p34 = scmp.eq.s32.totalorder %s17, 3
      %p35 = por %p33, %p34
      %p36 = scmp.ne.s32.totalorder %s25, %s26
      %p37 = scmp.eq.s32.totalorder %s17, 0
      %p38 = por %p36, %p37
      %p39 = scmp.ne.s32.totalorder %s25, %s26
      %p40 = scmp.eq.s32.totalorder %s18, 3
      %p41 = por %p39, %p40
      %p43 = scmp.ne.s32.totalorder %s26, %s42
      %p44 = scmp.eq.s32.totalorder %s18, 0
      %p45 = por %p43, %p44
      %s46 = ssub.s32 %s12, %s19
      %p47 = scmp.eq.s32.totalorder %s46, 0
      %s49 = sadd.s32 %s48, 1
      %s50 = scalar_select %p47, %s48, %s49
      %p53 = pneg %p47
      %p54 = scmp.eq.s32.totalorder %s12, 3
      %p55 = por %p53, %p54
      %p56 = scmp.ne.s32.totalorder %s48, %s51
      %p57 = scmp.eq.s32.totalorder %s12, 0
      %p58 = por %p56, %p57
      %p59 = scmp.ne.s32.totalorder %s48, %s51
      %p60 = scmp.eq.s32.totalorder %s17, 3
      %p61 = por %p59, %p60
      %p62 = scmp.ne.s32.totalorder %s51, %s52
      %p63 = scmp.eq.s32.totalorder %s17, 0
      %p64 = por %p62, %p63
      %p65 = scmp.ne.s32.totalorder %s51, %s52
      %p66 = scmp.eq.s32.totalorder %s18, 3
      %p67 = por %p65, %p66
      %p69 = scmp.ne.s32.totalorder %s52, %s68
      %p70 = scmp.eq.s32.totalorder %s18, 0
      %p71 = por %p69, %p70
      %s72 = ssub.s32 %s12, %s19
      %p73 = scmp.eq.s32.totalorder %s72, 0
      %s75 = sadd.s32 %s74, 1
      %s76 = scalar_select %p73, %s74, %s75
      %p79 = pneg %p73
      %p80 = scmp.eq.s32.totalorder %s12, 3
      %p81 = por %p79, %p80
      %p82 = scmp.ne.s32.totalorder %s74, %s77
      %p83 = scmp.eq.s32.totalorder %s12, 0
      %p84 = por %p82, %p83
      %p85 = scmp.ne.s32.totalorder %s74, %s77
      %p86 = scmp.eq.s32.totalorder %s17, 3
      %p87 = por %p85, %p86
      %p88 = scmp.ne.s32.totalorder %s77, %s78
      %p89 = scmp.eq.s32.totalorder %s17, 0
      %p90 = por %p88, %p89
      %p91 = scmp.ne.s32.totalorder %s77, %s78
      %p92 = scmp.eq.s32.totalorder %s18, 3
      %p93 = por %p91, %p92
      %p95 = scmp.ne.s32.totalorder %s78, %s94
      %p96 = scmp.eq.s32.totalorder %s18, 0
      %p97 = por %p95, %p96
      %s98 = ssub.s32 %s12, %s19
      %p99 = scmp.eq.s32.totalorder %s98, 0
      %s101 = sadd.s32 %s100, 1
      %s102 = scalar_select %p99, %s100, %s101
      %p105 = pneg %p99
      %p106 = scmp.eq.s32.totalorder %s12, 3
      %p107 = por %p105, %p106
      %p108 = scmp.ne.s32.totalorder %s100, %s103
      %p109 = scmp.eq.s32.totalorder %s12, 0
      %p110 = por %p108, %p109
      %p111 = scmp.ne.s32.totalorder %s100, %s103
      %p112 = scmp.eq.s32.totalorder %s17, 3
      %p113 = por %p111, %p112
      %p114 = scmp.ne.s32.totalorder %s103, %s104
      %p115 = scmp.eq.s32.totalorder %s17, 0
      %p116 = por %p114, %p115
      %p117 = scmp.ne.s32.totalorder %s103, %s104
      %p118 = scmp.eq.s32.totalorder %s18, 3
      %p119 = por %p117, %p118
      %p121 = scmp.ne.s32.totalorder %s104, %s120
      %p122 = scmp.eq.s32.totalorder %s18, 0
      %p123 = por %p121, %p122
      %p124 = scmp.le.s32.totalorder 1, %s12
      %p125 = scmp.lt.s32.totalorder %s12, 5
      %p126 = pnand %p124, %p125
      %p127 = pneg %p126
      // Predicated region
      $region9: #{tpu_custom_call.1} parent=5 // pred_check
        _
      $region10: #{tpu_custom_call.1} parent=5 // pred_check_branch
        %129 = sbr.rel (%p126) target = $region12
      $region11: #{tpu_custom_call.1} parent=5 // pred_region
        %s130 = ssub.s32 %s12, 1
      $region12: #{tpu_custom_call.1} parent=5 // pred_fallthru
        _
      %p131 = scmp.lt.s32.totalorder %s12, 4
      // Predicated region
      $region13: #{tpu_custom_call.1} parent=5 // pred_check
        %p132 = pneg %p131
      $region14: #{tpu_custom_call.1} parent=5 // pred_check_branch
        %134 = sbr.rel (%p132) target = $region16
      $region15: #{tpu_custom_call.1} parent=5 // pred_region
        // Predicated region
        $region17: #{tpu_custom_call.1} parent=15 // pred_check
          %p135 = pneg %p32
        $region18: #{tpu_custom_call.1} parent=15 // pred_check_branch
          %137 = sbr.rel (%p135) target = $region20
        $region19: #{tpu_custom_call.1} parent=15 // pred_region
          %p138 = scmp.lt.s32.totalorder %s12, 3
          %s139 = scalar_select %p138, %s12, 3
          %s140 = smul.addr %s139, 2
          %s141 = smul.addr %s140, 2
          %s142 = scalar_lea.vmem %s0, %s141
        $region20: #{tpu_custom_call.1} parent=15 // pred_fallthru
          _
        // Predicated region
        $region21: #{tpu_custom_call.1} parent=15 // pred_check
          %p143 = pneg %p58
        $region22: #{tpu_custom_call.1} parent=15 // pred_check_branch
          %145 = sbr.rel (%p143) target = $region24
        $region23: #{tpu_custom_call.1} parent=15 // pred_region
          %p146 = scmp.lt.s32.totalorder %s12, 3
          %s147 = scalar_select %p146, %s12, 3
          %s148 = smul.addr %s147, 2
          %s149 = scalar_lea.vmem %s1, %s148
        $region24: #{tpu_custom_call.1} parent=15 // pred_fallthru
          _
        // Predicated region
        $region25: #{tpu_custom_call.1} parent=15 // pred_check
          %p150 = pneg %p84
        $region26: #{tpu_custom_call.1} parent=15 // pred_check_branch
          %152 = sbr.rel (%p150) target = $region28
        $region27: #{tpu_custom_call.1} parent=15 // pred_region
          %p153 = scmp.lt.s32.totalorder %s12, 3
          %s154 = scalar_select %p153, %s12, 3
          %s155 = smul.addr %s154, 2
          %s156 = scalar_lea.vmem %s2, %s155
        $region28: #{tpu_custom_call.1} parent=15 // pred_fallthru
          _
      $region16: #{tpu_custom_call.1} parent=5 // pred_fallthru
        _
      %p157 = scmp.le.s32.totalorder 1, %s12
      %p158 = scmp.lt.s32.totalorder %s12, 5
      %p159 = pnand %p157, %p158
      %p160 = pneg %p159
      // Predicated region
      $region29: #{tpu_custom_call.1} parent=5 // pred_check
        _
      $region30: #{tpu_custom_call.1} parent=5 // pred_check_branch
        %162 = sbr.rel (%p159) target = $region32
      $region31: #{tpu_custom_call.1} parent=5 // pred_region
        %s163 = ssub.s32 %s12, 1
        %p164 = scmp.lt.s32.totalorder %s17, 3
        %s165 = scalar_select %p164, %s17, 3
        %s166 = smul.addr %s165, 2
        %s167 = smul.addr %s166, 2
        %s168 = scalar_lea.vmem %s0, %s167
        %p169 = pneg %p38
        %p170 = pneg %p35
        %p171 = scmp.lt.s32.totalorder %s17, 3
        %s172 = scalar_select %p171, %s17, 3
        %s173 = smul.addr %s172, 2
        %s174 = scalar_lea.vmem %s1, %s173
        %p175 = pneg %p64
        %p176 = pneg %p61
        %p177 = scmp.lt.s32.totalorder %s17, 3
        %s178 = scalar_select %p177, %s17, 3
        %s179 = smul.addr %s178, 2
        %s180 = scalar_lea.vmem %s2, %s179
        %p181 = pneg %p90
        %p182 = pneg %p87
        %p183 = pneg %p116
        %p184 = pneg %p113
        %s185 = sand.u32 %s103, 1
        %s186 = scalar_lea.sflag [#allocation3], %s185
        %s187 = sand.u32 %s103, 1
        %s188 = smul.addr %s187, 4
        %s189 = scalar_lea.vmem [#allocation2], %s188
        %p190 = scmp.lt.s32.totalorder %s17, 3
        %s191 = scalar_select %p190, %s17, 3
        %s192 = smul.addr %s191, 2
        %s193 = smul.addr %s192, 2
        %s194 = scalar_lea.vmem %s0, %s193
        %p195 = scmp.lt.s32.totalorder %s17, 3
        %s196 = scalar_select %p195, %s17, 3
        %s197 = smul.addr %s196, 2
        %s198 = scalar_lea.vmem %s1, %s197
        %p199 = scmp.lt.s32.totalorder %s17, 3
        %s200 = scalar_select %p199, %s17, 3
        %s201 = smul.addr %s200, 2
        %s202 = scalar_lea.vmem %s2, %s201
        %v203 = vld [vmem:[%s194] sm:$0xf]
        %v206 = vunpack.c.l.s4 1983009808
        %v207 = vunpack.c.0.s8 %v206
        %v208 = vlaneseq
        %v209 = vshrl.u32 %v208, 7
        %v210 = vsub.s32 %v207, %v209
        %v211 = vrot.slane %v203, %v210
        %v212 = vcombine.high %v211, %v211
        %vm215 = vcmask 1041408
        %v216 = vsel %vm215, %v211, 0.0
        %v217 = vsel %vm215, %v212, 0.0
        %v218 = vadd.f32 %v216, %v217
        %219 = vadd.xlane.f32.xlu0 %v218
        %v220 = vpop.xlane.xlu0 %219
        %v221 = vsel %vm215, %v220, 0.0
        %v222 = vrot.slane %v221, 4
        %v223 = vadd.f32 %v221, %v222
        %v224 = vrot.slane %v223, 2
        %v225 = vadd.f32 %v223, %v224
        %v226 = vrot.slane %v225, 1
        %v227 = vadd.f32 %v225, %v226
        %v228 = vmul.f32 %v203, %v203
        %v231 = vunpack.c.l.s4 1983009808
        %v232 = vunpack.c.0.s8 %v231
        %v233 = vlaneseq
        %v234 = vshrl.u32 %v233, 7
        %v235 = vsub.s32 %v232, %v234
        %v236 = vrot.slane %v228, %v235
        %v237 = vcombine.high %v236, %v236
        %v240 = vsel %vm215, %v236, 0.0
        %v241 = vsel %vm215, %v237, 0.0
        %v242 = vadd.f32 %v240, %v241
        %243 = vadd.xlane.f32.xlu0 %v242
        %v244 = vpop.xlane.xlu0 %243
        %v245 = vsel %vm215, %v244, 0.0
        %v246 = vrot.slane %v245, 4
        %v247 = vadd.f32 %v245, %v246
        %v248 = vrot.slane %v247, 2
        %v249 = vadd.f32 %v247, %v248
        %v250 = vrot.slane %v249, 1
        %v251 = vadd.f32 %v249, %v250
        %v252 = vmul.f32 %v227, 0.001953125
        %v253 = vmul.f32 %v227, %v252
        %v254 = vsub.f32 %v251, %v253
        %v255 = vmax.f32 %v254, 0.0
        %v256 = vmul.f32 %v255, 0.0019569471
        %v257 = vadd.f32 %v256, 1e-05
        %v258 = vrsqrt.pop %v257
        %v259 = vld [vmem:[%s198] sm:$0x3]
        %v260 = vmul.f32 %v259, %v258
        %v261 = vld [vmem:[%s202] sm:$0x3]
        %v262 = vmul.f32 %v252, %v260
        %v263 = vsub.f32 %v261, %v262
        %265 = vset.pattern.permute.xlu0 0
        %266 = vperm.xlu0 %265, %v260
        %v267 = vpop.permute.xlu0 %266
        %v269 = vunpack.c.l.s4 269488144
        %v270 = vunpack.c.0.s8 %v269
        %v271 = vlaneseq
        %v272 = vshrl.u32 %v271, 7
        %v273 = vsub.s32 %v270, %v272
        %v274 = vrot.slane %v267, %v273
        %v276 = vmul.f32 %v203, %v274
        %278 = vset.pattern.permute.xlu0 0
        %279 = vperm.xlu0 %278, %v263
        %v280 = vpop.permute.xlu0 %279
        %v282 = vunpack.c.l.s4 269488144
        %v283 = vunpack.c.0.s8 %v282
        %v284 = vlaneseq
        %v285 = vshrl.u32 %v284, 7
        %v286 = vsub.s32 %v283, %v285
        %v287 = vrot.slane %v280, %v286
        %v289 = vadd.f32 %v276, %v287
        %290 = vst [vmem:[%s189] sm:$0xf] %v289
        %s291 = sand.u32 %s103, 1
        %s292 = scalar_lea.sflag [#allocation3], %s291
        %s293 = sand.u32 %s103, 1
        %s294 = smul.addr %s293, 4
        %s295 = scalar_lea.vmem [#allocation2], %s294
        // Predicated region
        $region33: #{tpu_custom_call.1} parent=31 // pred_check
          %p296 = pneg %p113
        $region34: #{tpu_custom_call.1} parent=31 // pred_check_branch
          %298 = sbr.rel (%p296) target = $region36
        $region35: #{tpu_custom_call.1} parent=31 // pred_region
          %s300 = ssub.s32 64, 64
          %301 = vsyncadd %s292, %s300
          %s302 = smul.addr %s17, 2
          %s303 = smul.addr %s302, 32
          %s304 = scalar_lea.hbm %s3, %s303
          %s306 = sshll.u32 %s295, 4
          %s307 = int_to_ptr.vmem [resolvable:$true] %s306
          %309 = dma.vmem_to_hbm [thread:$0]  %s307, 64, %s304, %s292
        $region36: #{tpu_custom_call.1} parent=31 // pred_fallthru
          _
      $region32: #{tpu_custom_call.1} parent=5 // pred_fallthru
        _
      %p310 = scmp.le.s32.totalorder 2, %s12
      // Predicated region
      $region37: #{tpu_custom_call.1} parent=5 // pred_check
        %p311 = pneg %p310
      $region38: #{tpu_custom_call.1} parent=5 // pred_check_branch
        %313 = sbr.rel (%p311) target = $region40
      $region39: #{tpu_custom_call.1} parent=5 // pred_region
        %s314 = ssub.s32 %s12, 2
        // Predicated region
        $region41: #{tpu_custom_call.1} parent=39 // pred_check
          %p315 = pneg %p119
        $region42: #{tpu_custom_call.1} parent=39 // pred_check_branch
          %317 = sbr.rel (%p315) target = $region44
        $region43: #{tpu_custom_call.1} parent=39 // pred_region
          %s318 = sand.u32 %s104, 1
          %s319 = scalar_lea.sflag [#allocation3], %s318
          %s320 = sand.u32 %s104, 1
          %s321 = smul.addr %s320, 4
          %s322 = scalar_lea.vmem [#allocation2], %s321
          %323 = dma.done %s319, 64
        $region44: #{tpu_custom_call.1} parent=39 // pred_fallthru
          _
      $region40: #{tpu_custom_call.1} parent=5 // pred_fallthru
        _
    $region6: #{tpu_custom_call.1} parent=1 // loop_footer
      %s16 = sadd.s32 1, %s12
    $region7: #{tpu_custom_call.1} parent=1 // loop_footer_branch
      %11 = sbr.rel target = $region3
    $region8: #{tpu_custom_call.1} parent=1 // loop_exit
      _
    %324 = vsyncpa [#allocation3], 1
    %s325 = scalar_lea.sflag [#allocation3], 1
    %326 = vsyncpa %s325, 1

</llo_original>
